<compile_context>
chip_gen: v7x
topology: tpu7x:2x2x1
jax: 0.10.0
libtpu: 0.0.40
codegen_flags: <defaults>
</compile_context>

<pallas_src>
import functools

import jax
import jax.numpy as jnp
from jax import lax
from jax.experimental import pallas as pl
from jax.experimental.pallas import tpu as pltpu


def _head_kernel(x_ref, w_ref, o_ref, *, n_embed, seq_len, head_size):
    # x_ref: (B, T, C); w_ref: (3H, C) PyTorch layout; o_ref: (B, T, H)
    B, T, C = x_ref.shape
    H = head_size

    # Fused QKV projection. Flatten (B, T) -> B*T rows (T is a multiple of the
    # 8-row sublane tile, so this reshape is layout-clean) and contract the C
    # axis of both operands — no weight transpose is ever materialized.
    x2d = x_ref[...].reshape(B * T, C)                              # (B*T, C)
    qkv = lax.dot_general(
        x2d, w_ref[...],
        dimension_numbers=(((1,), (1,)), ((), ())),                 # btc,hc->bth (flattened)
        preferred_element_type=jnp.float32)                         # (B*T, 3H)
    qkv = qkv.reshape(B, T, 3 * H)
    q = qkv[:, :, 0 * H:1 * H]                                      # (B, T, H)
    k = qkv[:, :, 1 * H:2 * H]
    v = qkv[:, :, 2 * H:3 * H]

    # Scores: batched q @ k^T, contracting the head dim of both operands
    # (lets Mosaic feed the MXU without an XLU transpose of k).
    # NOTE: PyTorch module scales by n_embed**-0.5 (C), not head_size**-0.5.
    scale = n_embed ** (-0.5)
    s = lax.dot_general(
        q, k,
        dimension_numbers=(((2,), (2,)), ((0,), (0,))),             # bqh,bkh->bqk
        preferred_element_type=jnp.float32) * scale                 # (B, T, T)

    # Causal mask: every row has >= 1 unmasked entry, so -inf is NaN-safe here.
    row = lax.broadcasted_iota(jnp.int32, (1, seq_len, seq_len), 1)
    col = lax.broadcasted_iota(jnp.int32, (1, seq_len, seq_len), 2)
    s = jnp.where(row >= col, s, -jnp.inf)

    # Softmax along the last dim; denominator reciprocal goes to the EUP.
    m = jnp.max(s, axis=-1, keepdims=True)
    p = jnp.exp(s - m)
    p = p * pl.reciprocal(jnp.sum(p, axis=-1, keepdims=True), approx=True)

    # Dropout on attention weights skipped (eval-mode identity).

    o = lax.dot_general(
        p, v,
        dimension_numbers=(((2,), (1,)), ((0,), (0,))),             # bqk,bkh->bqh
        preferred_element_type=jnp.float32)                         # (B, T, H)
    o_ref[...] = o.astype(o_ref.dtype)


def head_forward(x, wq, wk, wv):
    """x: (B, T, C).  wq/wk/wv: PyTorch Linear layout (head_size, n_embed)."""
    B, T, C = x.shape
    H = wq.shape[0]

    # Fuse the three projection weights once, keeping PyTorch (out, in) layout
    # (kernel contracts on axis 1, so no transpose is needed). In a real model
    # this fused weight would be materialized once at parameter-load time.
    w_qkv = jnp.concatenate([wq, wk, wv], axis=0)                   # (3H, C)

    kernel = functools.partial(
        _head_kernel, n_embed=C, seq_len=T, head_size=H)

    return pl.pallas_call(
        kernel,
        out_shape=jax.ShapeDtypeStruct((B, T, H), x.dtype),
        grid_spec=pltpu.PrefetchScalarGridSpec(
            num_scalar_prefetch=0,
            grid=(1,),  # whole batch in one step: avoids per-step overhead
            in_specs=[
                pl.BlockSpec((B, T, C), lambda i: (0, 0, 0)),
                pl.BlockSpec((3 * H, C), lambda i: (0, 0)),
            ],
            out_specs=pl.BlockSpec((B, T, H), lambda i: (0, 0, 0)),
        ),
        compiler_params=pltpu.CompilerParams(
            dimension_semantics=("arbitrary",)),
    )(x, w_qkv)


def head_reference(x, wq, wk, wv):
    """Pure-JAX reference mirroring the PyTorch forward (eval mode)."""
    B, T, C = x.shape
    q = x @ wq.T
    k = x @ wk.T
    v = x @ wv.T
    s = (q @ jnp.swapaxes(k, -2, -1)) * C ** (-0.5)
    mask = jnp.tril(jnp.ones((T, T), dtype=bool))
    s = jnp.where(mask, s, -jnp.inf)
    w = jax.nn.softmax(s, axis=-1)
    return w @ v


if __name__ == "__main__":
    # Small shapes consistent with the module.
    B, T, C, H = 2, 8, 32, 16  # batch, seq (== BLOCK_SIZE), n_embed, head_size

    key = jax.random.PRNGKey(0)
    kx, kq, kk, kv = jax.random.split(key, 4)

    x = jax.random.normal(kx, (B, T, C), dtype=jnp.float32)
    # Deterministic weights, PyTorch Linear layout: (out_features, in_features).
    bound = 1.0 / jnp.sqrt(C)
    wq = jax.random.uniform(kq, (H, C), jnp.float32, -bound, bound)
    wk = jax.random.uniform(kk, (H, C), jnp.float32, -bound, bound)
    wv = jax.random.uniform(kv, (H, C), jnp.float32, -bound, bound)

    out = jax.block_until_ready(head_forward(x, wq, wk, wv))
    ref = head_reference(x, wq, wk, wv)

    assert out.shape == (B, T, H), out.shape
    # Tolerance is slightly looser than exact-division f32 because the softmax
    # denominator uses the EUP approximate reciprocal; a genuinely wrong kernel
    # (mask/scale/layout bug) produces errors orders of magnitude larger.
    assert jnp.allclose(out, ref, atol=5e-3, rtol=5e-3), "mismatch vs reference"
    print("KERNEL_OK")
</pallas_src>

<mosaic_0001>
module attributes {stable_mosaic.version = 11 : i64} {
  func.func @_head_kernel(%arg0: i32, %arg1: memref<2x8x32xf32, #tpu.memory_space<vmem>>, %arg2: memref<48x32xf32, #tpu.memory_space<vmem>>, %arg3: memref<2x8x16xf32, #tpu.memory_space<vmem>>) attributes {dimension_semantics = [#tpu.dimension_semantics<arbitrary>], iteration_bounds = array<i64: 1>, scalar_prefetch = 0 : i64, scratch_operands = 0 : i64, tpu.core_type = #tpu.core_type<tc>, window_params = [{pipeline_mode = #tpu.pipeline_mode<synchronous>, transform_indices = @transform_0, window_bounds = array<i64: 2, 8, 32>}, {pipeline_mode = #tpu.pipeline_mode<synchronous>, transform_indices = @transform_1, window_bounds = array<i64: 48, 32>}, {pipeline_mode = #tpu.pipeline_mode<synchronous>, transform_indices = @transform_2, window_bounds = array<i64: 2, 8, 16>}]} {
    %c0 = arith.constant 0 : index
    %c0_0 = arith.constant 0 : index
    %c0_1 = arith.constant 0 : index
    %0 = vector.load %arg1[%c0, %c0_0, %c0_1] : memref<2x8x32xf32, #tpu.memory_space<vmem>>, vector<2x8x32xf32>
    %1 = vector.shape_cast %0 : vector<2x8x32xf32> to vector<16x32xf32>
    %c0_2 = arith.constant 0 : index
    %c0_3 = arith.constant 0 : index
    %2 = vector.load %arg2[%c0_2, %c0_3] : memref<48x32xf32, #tpu.memory_space<vmem>>, vector<48x32xf32>
    %cst = arith.constant dense<0.000000e+00> : vector<16x48xf32>
    %3 = tpu.matmul %1, %2, %cst {dimension_numbers = #tpu.dot_dimension_numbers<[1], [1], [0], [0], [0, 0, 1, 0], [], []>} : vector<16x32xf32>, vector<48x32xf32>, vector<16x48xf32> -> vector<16x48xf32>
    %4 = vector.shape_cast %3 : vector<16x48xf32> to vector<2x8x48xf32>
    %5 = vector.extract_strided_slice %4 {offsets = [0, 0, 0], sizes = [2, 8, 16], strides = [1, 1, 1]} : vector<2x8x48xf32> to vector<2x8x16xf32>
    %6 = vector.extract_strided_slice %4 {offsets = [0, 0, 16], sizes = [2, 8, 16], strides = [1, 1, 1]} : vector<2x8x48xf32> to vector<2x8x16xf32>
    %7 = vector.extract_strided_slice %4 {offsets = [0, 0, 32], sizes = [2, 8, 16], strides = [1, 1, 1]} : vector<2x8x48xf32> to vector<2x8x16xf32>
    %cst_4 = arith.constant dense<0.000000e+00> : vector<2x8x8xf32>
    %8 = tpu.matmul %5, %6, %cst_4 {dimension_numbers = #tpu.dot_dimension_numbers<[2], [2], [1], [1], [0, 0, 0, 1, 1, 1], [0], [0]>} : vector<2x8x16xf32>, vector<2x8x16xf32>, vector<2x8x8xf32> -> vector<2x8x8xf32>
    %cst_5 = arith.constant 0.176776692 : f32
    %9 = vector.broadcast %cst_5 : f32 to vector<2x8x8xf32>
    %10 = arith.mulf %8, %9 : vector<2x8x8xf32>
    %11 = tpu.iota {dimensions = array<i32: 1>} : vector<1x8x8xi32>
    %12 = tpu.iota {dimensions = array<i32: 2>} : vector<1x8x8xi32>
    %13 = arith.cmpi sge, %11, %12 : vector<1x8x8xi32>
    %cst_6 = arith.constant 0xFF800000 : f32
    %14 = vector.shape_cast %13 : vector<1x8x8xi1> to vector<1x8x8xi1>
    %15 = vector.broadcast %14 : vector<1x8x8xi1> to vector<2x8x8xi1>
    %16 = vector.broadcast %cst_6 : f32 to vector<2x8x8xf32>
    %17 = arith.select %15, %10, %16 : vector<2x8x8xi1>, vector<2x8x8xf32>
    %cst_7 = arith.constant dense<0xFF800000> : vector<2x8xf32>
    %18 = vector.multi_reduction <maximumf>, %17, %cst_7 [2] : vector<2x8x8xf32> to vector<2x8xf32>
    %19 = vector.shape_cast %18 : vector<2x8xf32> to vector<2x8x1xf32>
    %20 = vector.broadcast %19 : vector<2x8x1xf32> to vector<2x8x8xf32>
    %21 = arith.subf %17, %20 : vector<2x8x8xf32>
    %22 = math.exp %21 : vector<2x8x8xf32>
    %cst_8 = arith.constant dense<0.000000e+00> : vector<2x8xf32>
    %23 = vector.multi_reduction <add>, %22, %cst_8 [2] : vector<2x8x8xf32> to vector<2x8xf32>
    %24 = vector.shape_cast %23 : vector<2x8xf32> to vector<2x8x1xf32>
    %25 = tpu.reciprocal %24 {approx = true} : vector<2x8x1xf32> -> vector<2x8x1xf32>
    %26 = vector.broadcast %25 : vector<2x8x1xf32> to vector<2x8x8xf32>
    %27 = arith.mulf %22, %26 : vector<2x8x8xf32>
    %cst_9 = arith.constant dense<0.000000e+00> : vector<2x8x16xf32>
    %28 = tpu.matmul %27, %7, %cst_9 {dimension_numbers = #tpu.dot_dimension_numbers<[2], [1], [1], [2], [0, 0, 0, 1, 1, 2], [0], [0]>} : vector<2x8x8xf32>, vector<2x8x16xf32>, vector<2x8x16xf32> -> vector<2x8x16xf32>
    %c0_10 = arith.constant 0 : index
    %c0_11 = arith.constant 0 : index
    %c0_12 = arith.constant 0 : index
    %29 = vector.load %arg3[%c0_10, %c0_11, %c0_12] : memref<2x8x16xf32, #tpu.memory_space<vmem>>, vector<2x8x16xf32>
    tpu.vector_store %arg3[%c0_10, %c0_11, %c0_12], %28 {strides = array<i32>} : memref<2x8x16xf32, #tpu.memory_space<vmem>>, vector<2x8x16xf32>,
    return
  }
  func.func @transform_0(%arg0: i32) -> (i32, i32, i32) {
    %c0_i32 = arith.constant 0 : i32
    %c0_i32_0 = arith.constant 0 : i32
    %c0_i32_1 = arith.constant 0 : i32
    %c0_i32_2 = arith.constant 0 : i32
    return %c0_i32, %c0_i32_0, %c0_i32_1 : i32, i32, i32
  }
  func.func @transform_1(%arg0: i32) -> (i32, i32) {
    %c0_i32 = arith.constant 0 : i32
    %c0_i32_0 = arith.constant 0 : i32
    %c0_i32_1 = arith.constant 0 : i32
    return %c0_i32, %c0_i32_0 : i32, i32
  }
  func.func @transform_2(%arg0: i32) -> (i32, i32, i32) {
    %c0_i32 = arith.constant 0 : i32
    %c0_i32_0 = arith.constant 0 : i32
    %c0_i32_1 = arith.constant 0 : i32
    %c0_i32_2 = arith.constant 0 : i32
    return %c0_i32, %c0_i32_0, %c0_i32_1 : i32, i32, i32
  }
}

</mosaic_0001>

<llo_original>
// kernel: tpu_custom_call.1
$region0: #{tpu_custom_call.1}
  #allocation0 [shape = 'u32[]', space=smem, size = 0x4, offset = 0x4, fixed_abs, tag = 'smem constant byte address 0x4 - core index']
  #allocation1 [shape = 'u32[144,128]{1,0:T(1,128)}', space=vmem, size = 0x12000, scoped, tag = 'internal scratch']
  %s0 = inlined_call_operand.vmem [shape: f32[2,8,32], index: 0, kind: input, shape index: {}]
  %s1 = inlined_call_operand.vmem [shape: f32[48,32], index: 1, kind: input, shape index: {}]
  %s2 = inlined_call_operand.hbm [shape: f32[2,8,16], index: 2, kind: output, shape index: {}]
  %s3 = sld [smem:[#allocation0]]
  $region18: #{tpu_custom_call.1} parent=0
    _
  %s5 = ssub.s32 1, %s3
  %s6 = scalar_select 0, %s5, %s3
  $region1: #{tpu_custom_call.1} parent=0
    #allocation2 [shape = 'u8[8192]{0}', space=vmem, size = 0x2000, scoped, tag = 'output window, operand 0, single buffered']
    #allocation3 [shape = 's32[1]{0}', space=sflag, size = 0x4, scoped, tag = 'scoped memory for tpu_custom_call.1']
    %7 = vsyncpa [#allocation3], 0
    // Predicated region
    $region2: #{tpu_custom_call.1} parent=1 // pred_check
      _
    $region3: #{tpu_custom_call.1} parent=1 // pred_check_branch
      %9 = sbr.rel (0) target = $region5
    $region4: #{tpu_custom_call.1} parent=1 // pred_region
      _
    $region5: #{tpu_custom_call.1} parent=1 // pred_fallthru
      _
    // Predicated region
    $region6: #{tpu_custom_call.1} parent=1 // pred_check
      _
    $region7: #{tpu_custom_call.1} parent=1 // pred_check_branch
      %11 = sbr.rel (0) target = $region9
    $region8: #{tpu_custom_call.1} parent=1 // pred_region
      _
    $region9: #{tpu_custom_call.1} parent=1 // pred_fallthru
      _
    %v12 = vld [vmem:[%s0] sm:$0xff]
    %v13 = vld [vmem:[%s0 + $0x8] sm:$0xff]
    %v14 = vld [vmem:[%s1] sm:$0xff]
    %v15 = vld [vmem:[%s1 + $0x8] sm:$0xff]
    %v16 = vld [vmem:[%s1 + $0x10] sm:$0xff]
    %v17 = vld [vmem:[%s1 + $0x18] sm:$0xff]
    %v18 = vld [vmem:[%s1 + $0x20] sm:$0xff]
    %v19 = vld [vmem:[%s1 + $0x28] sm:$0xff]
    %vm20 = vcmask 261120
    %v22 = vsel %vm20, %v12, 0
    %v25 = vsel %vm20, %v13, 0
    %v28 = vsel %vm20, %v14, 0
    %v31 = vsel %vm20, %v15, 0
    %v34 = vsel %vm20, %v16, 0
    %v37 = vsel %vm20, %v17, 0
    %v40 = vsel %vm20, %v18, 0
    %v43 = vsel %vm20, %v19, 0
    %45 = vmatprep.subr.mxu0 0.0
    %46 = vmatpush1.xpose.msra.mxu0 %v28
    %47 = vmatprep.subr.mxu0 0.0
    %48 = vmatpush1.xpose.msra.mxu0 %v31
    %49 = vmatprep.subr.mxu0 0.0
    %50 = vmatpush1.xpose.msra.mxu0 %v34
    %51 = vmatprep.subr.mxu0 0.0
    %52 = vmatpush1.xpose.msra.mxu0 %v37
    %53 = vmatprep.subr.mxu0 0.0
    %54 = vmatpush1.xpose.msra.mxu0 %v40
    %55 = vmatprep.subr.mxu0 0.0
    %56 = vmatpush1.xpose.msra.mxu0 %v43
    %57 = vmatprep.subr.mxu0 0.0
    %58 = vmatpush1.xpose.msra.mxu0 0.0
    %59 = vmatprep.subr.mxu0 0.0
    %60 = vmatpush1.xpose.msra.mxu0 0.0
    %61 = vmatprep.subr.mxu0 0.0
    %62 = vmatpush1.xpose.msra.mxu0 0.0
    %63 = vmatprep.subr.mxu0 0.0
    %64 = vmatpush1.xpose.msra.mxu0 0.0
    %65 = vmatprep.subr.mxu0 0.0
    %66 = vmatpush1.xpose.msra.mxu0 0.0
    %67 = vmatprep.subr.mxu0 0.0
    %68 = vmatpush1.xpose.msra.mxu0 0.0
    %69 = vmatprep.subr.mxu0 0.0
    %70 = vmatpush1.xpose.msra.mxu0 0.0
    %71 = vmatprep.subr.mxu0 0.0
    %72 = vmatpush1.xpose.msra.mxu0 0.0
    %73 = vmatprep.subr.mxu0 0.0
    %74 = vmatpush1.xpose.msra.mxu0 0.0
    %75 = vmatprep.subr.mxu0 0.0
    %76 = vmatpush1.xpose.msra.mxu0 0.0
    %77 = vmatprep.subr.mxu0 0.0
    %78 = vmatpush1.xpose.msra.mxu0 0.0
    %79 = vmatprep.subr.mxu0 0.0
    %80 = vmatpush1.xpose.msra.mxu0 0.0
    %81 = vmatprep.subr.mxu0 0.0
    %82 = vmatpush1.xpose.msra.mxu0 0.0
    %83 = vmatprep.subr.mxu0 0.0
    %84 = vmatpush1.xpose.msra.mxu0 0.0
    %85 = vmatprep.subr.mxu0 0.0
    %86 = vmatpush1.xpose.msra.mxu0 0.0
    %87 = vmatprep.subr.mxu0 0.0
    %88 = vmatpush1.xpose.msra.mxu0 0.0
    %89 = vmatprep.subr.mxu0 0.0
    %90 = vmatpush1.xpose.msra.mxu0 0.0
    %91 = vmatprep.subr.mxu0 0.0
    %92 = vmatpush1.xpose.msra.mxu0 0.0
    %93 = vmatprep.subr.mxu0 0.0
    %94 = vmatpush1.xpose.msra.mxu0 0.0
    %95 = vmatprep.subr.mxu0 0.0
    %96 = vmatpush1.xpose.msra.mxu0 0.0
    %97 = vmatprep.subr.mxu0 0.0
    %98 = vmatpush1.xpose.msra.mxu0 0.0
    %99 = vmatprep.subr.mxu0 0.0
    %100 = vmatpush1.xpose.msra.mxu0 0.0
    %101 = vmatprep.subr.mxu0 0.0
    %102 = vmatpush1.xpose.msra.mxu0 0.0
    %103 = vmatprep.subr.mxu0 0.0
    %104 = vmatpush1.xpose.msra.mxu0 0.0
    %105 = vmatprep.subr.mxu0 0.0
    %106 = vmatpush1.xpose.msra.mxu0 0.0
    %107 = vmatprep.subr.mxu0 0.0
    %108 = vmatpush1.xpose.msra.mxu0 0.0
    %109 = vmatprep.mubr.f32.mxu0 0.0
    %110 = vmatmul.mubr.f32.gmra.mrb[0].mxu0 %v22
    %v111 = vpop.f32.mrb[0].mxu0
    %v112 = vadd.f32 0.0, %v111
    %v113 = vpop.f32.mrb[0].mxu0
    %114 = vmatprep.mubr.f32.mxu0 0.0
    %115 = vmatmul.mubr.f32.gmra.mrb[0].mxu0 %v25
    %v116 = vpop.f32.mrb[0].mxu0
    %v117 = vadd.f32 0.0, %v116
    %v118 = vpop.f32.mrb[0].mxu0
    %119 = vdwg.mxu0
    %121 = vrot.lane.b32.xlu0 %v112, 112
    %v122 = vpop.permute.xlu0 %121
    %vm123 = vcmask 130048
    %v124 = vsel %vm123, %v112, 0
    %v126 = vsel %vm123, %v122, 0
    %128 = vmatprep.subr.mxu0 0.0
    %129 = vmatpush1.xpose.msra.mxu0 %v126
    %130 = vmatprep.subr.mxu0 0.0
    %131 = vmatpush1.xpose.msra.mxu0 0.0
    %132 = vmatprep.subr.mxu0 0.0
    %133 = vmatpush1.xpose.msra.mxu0 0.0
    %134 = vmatprep.subr.mxu0 0.0
    %135 = vmatpush1.xpose.msra.mxu0 0.0
    %136 = vmatprep.subr.mxu0 0.0
    %137 = vmatpush1.xpose.msra.mxu0 0.0
    %138 = vmatprep.subr.mxu0 0.0
    %139 = vmatpush1.xpose.msra.mxu0 0.0
    %140 = vmatprep.subr.mxu0 0.0
    %141 = vmatpush1.xpose.msra.mxu0 0.0
    %142 = vmatprep.subr.mxu0 0.0
    %143 = vmatpush1.xpose.msra.mxu0 0.0
    %144 = vmatprep.subr.mxu0 0.0
    %145 = vmatpush1.xpose.msra.mxu0 0.0
    %146 = vmatprep.subr.mxu0 0.0
    %147 = vmatpush1.xpose.msra.mxu0 0.0
    %148 = vmatprep.subr.mxu0 0.0
    %149 = vmatpush1.xpose.msra.mxu0 0.0
    %150 = vmatprep.subr.mxu0 0.0
    %151 = vmatpush1.xpose.msra.mxu0 0.0
    %152 = vmatprep.subr.mxu0 0.0
    %153 = vmatpush1.xpose.msra.mxu0 0.0
    %154 = vmatprep.subr.mxu0 0.0
    %155 = vmatpush1.xpose.msra.mxu0 0.0
    %156 = vmatprep.subr.mxu0 0.0
    %157 = vmatpush1.xpose.msra.mxu0 0.0
    %158 = vmatprep.subr.mxu0 0.0
    %159 = vmatpush1.xpose.msra.mxu0 0.0
    %160 = vmatprep.subr.mxu0 0.0
    %161 = vmatpush1.xpose.msra.mxu0 0.0
    %162 = vmatprep.subr.mxu0 0.0
    %163 = vmatpush1.xpose.msra.mxu0 0.0
    %164 = vmatprep.subr.mxu0 0.0
    %165 = vmatpush1.xpose.msra.mxu0 0.0
    %166 = vmatprep.subr.mxu0 0.0
    %167 = vmatpush1.xpose.msra.mxu0 0.0
    %168 = vmatprep.subr.mxu0 0.0
    %169 = vmatpush1.xpose.msra.mxu0 0.0
    %170 = vmatprep.subr.mxu0 0.0
    %171 = vmatpush1.xpose.msra.mxu0 0.0
    %172 = vmatprep.subr.mxu0 0.0
    %173 = vmatpush1.xpose.msra.mxu0 0.0
    %174 = vmatprep.subr.mxu0 0.0
    %175 = vmatpush1.xpose.msra.mxu0 0.0
    %176 = vmatprep.subr.mxu0 0.0
    %177 = vmatpush1.xpose.msra.mxu0 0.0
    %178 = vmatprep.subr.mxu0 0.0
    %179 = vmatpush1.xpose.msra.mxu0 0.0
    %180 = vmatprep.subr.mxu0 0.0
    %181 = vmatpush1.xpose.msra.mxu0 0.0
    %182 = vmatprep.subr.mxu0 0.0
    %183 = vmatpush1.xpose.msra.mxu0 0.0
    %184 = vmatprep.subr.mxu0 0.0
    %185 = vmatpush1.xpose.msra.mxu0 0.0
    %186 = vmatprep.subr.mxu0 0.0
    %187 = vmatpush1.xpose.msra.mxu0 0.0
    %188 = vmatprep.subr.mxu0 0.0
    %189 = vmatpush1.xpose.msra.mxu0 0.0
    %190 = vmatprep.subr.mxu0 0.0
    %191 = vmatpush1.xpose.msra.mxu0 0.0
    %192 = vmatprep.mubr.f32.mxu0 0.0
    %193 = vmatmul.mubr.f32.gmra.mrb[0].mxu0 %v124
    %v194 = vpop.f32.mrb[0].mxu0
    %v195 = vadd.f32 0.0, %v194
    %v196 = vpop.f32.mrb[0].mxu0
    %197 = vdwg.mxu0
    %199 = vrot.lane.b32.xlu0 %v117, 112
    %v200 = vpop.permute.xlu0 %199
    %v201 = vsel %vm123, %v117, 0
    %v203 = vsel %vm123, %v200, 0
    %205 = vmatprep.subr.mxu0 0.0
    %206 = vmatpush1.xpose.msra.mxu0 %v203
    %207 = vmatprep.subr.mxu0 0.0
    %208 = vmatpush1.xpose.msra.mxu0 0.0
    %209 = vmatprep.subr.mxu0 0.0
    %210 = vmatpush1.xpose.msra.mxu0 0.0
    %211 = vmatprep.subr.mxu0 0.0
    %212 = vmatpush1.xpose.msra.mxu0 0.0
    %213 = vmatprep.subr.mxu0 0.0
    %214 = vmatpush1.xpose.msra.mxu0 0.0
    %215 = vmatprep.subr.mxu0 0.0
    %216 = vmatpush1.xpose.msra.mxu0 0.0
    %217 = vmatprep.subr.mxu0 0.0
    %218 = vmatpush1.xpose.msra.mxu0 0.0
    %219 = vmatprep.subr.mxu0 0.0
    %220 = vmatpush1.xpose.msra.mxu0 0.0
    %221 = vmatprep.subr.mxu0 0.0
    %222 = vmatpush1.xpose.msra.mxu0 0.0
    %223 = vmatprep.subr.mxu0 0.0
    %224 = vmatpush1.xpose.msra.mxu0 0.0
    %225 = vmatprep.subr.mxu0 0.0
    %226 = vmatpush1.xpose.msra.mxu0 0.0
    %227 = vmatprep.subr.mxu0 0.0
    %228 = vmatpush1.xpose.msra.mxu0 0.0
    %229 = vmatprep.subr.mxu0 0.0
    %230 = vmatpush1.xpose.msra.mxu0 0.0
    %231 = vmatprep.subr.mxu0 0.0
    %232 = vmatpush1.xpose.msra.mxu0 0.0
    %233 = vmatprep.subr.mxu0 0.0
    %234 = vmatpush1.xpose.msra.mxu0 0.0
    %235 = vmatprep.subr.mxu0 0.0
    %236 = vmatpush1.xpose.msra.mxu0 0.0
    %237 = vmatprep.subr.mxu0 0.0
    %238 = vmatpush1.xpose.msra.mxu0 0.0
    %239 = vmatprep.subr.mxu0 0.0
    %240 = vmatpush1.xpose.msra.mxu0 0.0
    %241 = vmatprep.subr.mxu0 0.0
    %242 = vmatpush1.xpose.msra.mxu0 0.0
    %243 = vmatprep.subr.mxu0 0.0
    %244 = vmatpush1.xpose.msra.mxu0 0.0
    %245 = vmatprep.subr.mxu0 0.0
    %246 = vmatpush1.xpose.msra.mxu0 0.0
    %247 = vmatprep.subr.mxu0 0.0
    %248 = vmatpush1.xpose.msra.mxu0 0.0
    %249 = vmatprep.subr.mxu0 0.0
    %250 = vmatpush1.xpose.msra.mxu0 0.0
    %251 = vmatprep.subr.mxu0 0.0
    %252 = vmatpush1.xpose.msra.mxu0 0.0
    %253 = vmatprep.subr.mxu0 0.0
    %254 = vmatpush1.xpose.msra.mxu0 0.0
    %255 = vmatprep.subr.mxu0 0.0
    %256 = vmatpush1.xpose.msra.mxu0 0.0
    %257 = vmatprep.subr.mxu0 0.0
    %258 = vmatpush1.xpose.msra.mxu0 0.0
    %259 = vmatprep.subr.mxu0 0.0
    %260 = vmatpush1.xpose.msra.mxu0 0.0
    %261 = vmatprep.subr.mxu0 0.0
    %262 = vmatpush1.xpose.msra.mxu0 0.0
    %263 = vmatprep.subr.mxu0 0.0
    %264 = vmatpush1.xpose.msra.mxu0 0.0
    %265 = vmatprep.subr.mxu0 0.0
    %266 = vmatpush1.xpose.msra.mxu0 0.0
    %267 = vmatprep.subr.mxu0 0.0
    %268 = vmatpush1.xpose.msra.mxu0 0.0
    %269 = vmatprep.mubr.f32.mxu0 0.0
    %270 = vmatmul.mubr.f32.gmra.mrb[0].mxu0 %v201
    %v271 = vpop.f32.mrb[0].mxu0
    %v272 = vadd.f32 0.0, %v271
    %v273 = vpop.f32.mrb[0].mxu0
    %274 = vdwg.mxu0
    %v275 = vmul.f32 %v195, 0.17677669
    %v276 = vmul.f32 %v272, 0.17677669
    %v277 = vlaneseq
    %v278 = vshrl.u32 %v277, 7
    %v279 = vlaneseq
    %v280 = vand.u32 %v279, 127
    %vm281 = vcmp.ge.s32.totalorder %v278, %v280
    %v282 = vsel %vm281, 1, 0
    %vm283 = vcmp.eq.s32.totalorder %v282, 1
    %v284 = vsel %vm283, %v275, -inf
    %v285 = vsel %vm283, %v276, -inf
    %vm286 = vcmask 64512
    %v287 = vsel %vm286, %v284, -inf
    %288 = vmax.xlane.f32.xlu0 %v287
    %v289 = vpop.xlane.xlu0 %288
    %v290 = vsel %vm286, %v285, -inf
    %291 = vmax.xlane.f32.xlu0 %v290
    %v292 = vpop.xlane.xlu0 %291
    %v293 = vsub.f32 %v284, %v289
    %v294 = vsub.f32 %v285, %v292
    %v295 = vmul.f32 %v293, 1.442695
    %v296 = vpow.pop %v295
    %v297 = vmul.f32 %v294, 1.442695
    %v298 = vpow.pop %v297
    %v299 = vsel %vm286, %v296, 0.0
    %300 = vadd.xlane.f32.xlu0 %v299
    %v301 = vpop.xlane.xlu0 %300
    %v302 = vsel %vm286, %v298, 0.0
    %303 = vadd.xlane.f32.xlu0 %v302
    %v304 = vpop.xlane.xlu0 %303
    %v305 = vrcp.pop %v301
    %v306 = vrcp.pop %v304
    %v307 = vmul.f32 %v296, %v305
    %v308 = vmul.f32 %v298, %v306
    %309 = vrot.lane.b32.xlu0 %v112, 96
    %v310 = vpop.permute.xlu0 %309
    %v313 = vsel %vm286, %v307, 0
    %315 = vmatprep.subr.mxu0 0.0
    %316 = vmatpush1.msra.mxu0 %v310
    %317 = vmatprep.subr.mxu0 0.0
    %318 = vmatpush1.msra.mxu0 0.0
    %319 = vmatprep.subr.mxu0 0.0
    %320 = vmatpush1.msra.mxu0 0.0
    %321 = vmatprep.subr.mxu0 0.0
    %322 = vmatpush1.msra.mxu0 0.0
    %323 = vmatprep.subr.mxu0 0.0
    %324 = vmatpush1.msra.mxu0 0.0
    %325 = vmatprep.subr.mxu0 0.0
    %326 = vmatpush1.msra.mxu0 0.0
    %327 = vmatprep.subr.mxu0 0.0
    %328 = vmatpush1.msra.mxu0 0.0
    %329 = vmatprep.subr.mxu0 0.0
    %330 = vmatpush1.msra.mxu0 0.0
    %331 = vmatprep.subr.mxu0 0.0
    %332 = vmatpush1.msra.mxu0 0.0
    %333 = vmatprep.subr.mxu0 0.0
    %334 = vmatpush1.msra.mxu0 0.0
    %335 = vmatprep.subr.mxu0 0.0
    %336 = vmatpush1.msra.mxu0 0.0
    %337 = vmatprep.subr.mxu0 0.0
    %338 = vmatpush1.msra.mxu0 0.0
    %339 = vmatprep.subr.mxu0 0.0
    %340 = vmatpush1.msra.mxu0 0.0
    %341 = vmatprep.subr.mxu0 0.0
    %342 = vmatpush1.msra.mxu0 0.0
    %343 = vmatprep.subr.mxu0 0.0
    %344 = vmatpush1.msra.mxu0 0.0
    %345 = vmatprep.subr.mxu0 0.0
    %346 = vmatpush1.msra.mxu0 0.0
    %347 = vmatprep.subr.mxu0 0.0
    %348 = vmatpush1.msra.mxu0 0.0
    %349 = vmatprep.subr.mxu0 0.0
    %350 = vmatpush1.msra.mxu0 0.0
    %351 = vmatprep.subr.mxu0 0.0
    %352 = vmatpush1.msra.mxu0 0.0
    %353 = vmatprep.subr.mxu0 0.0
    %354 = vmatpush1.msra.mxu0 0.0
    %355 = vmatprep.subr.mxu0 0.0
    %356 = vmatpush1.msra.mxu0 0.0
    %357 = vmatprep.subr.mxu0 0.0
    %358 = vmatpush1.msra.mxu0 0.0
    %359 = vmatprep.subr.mxu0 0.0
    %360 = vmatpush1.msra.mxu0 0.0
    %361 = vmatprep.subr.mxu0 0.0
    %362 = vmatpush1.msra.mxu0 0.0
    %363 = vmatprep.subr.mxu0 0.0
    %364 = vmatpush1.msra.mxu0 0.0
    %365 = vmatprep.subr.mxu0 0.0
    %366 = vmatpush1.msra.mxu0 0.0
    %367 = vmatprep.subr.mxu0 0.0
    %368 = vmatpush1.msra.mxu0 0.0
    %369 = vmatprep.subr.mxu0 0.0
    %370 = vmatpush1.msra.mxu0 0.0
    %371 = vmatprep.subr.mxu0 0.0
    %372 = vmatpush1.msra.mxu0 0.0
    %373 = vmatprep.subr.mxu0 0.0
    %374 = vmatpush1.msra.mxu0 0.0
    %375 = vmatprep.subr.mxu0 0.0
    %376 = vmatpush1.msra.mxu0 0.0
    %377 = vmatprep.subr.mxu0 0.0
    %378 = vmatpush1.msra.mxu0 0.0
    %379 = vmatprep.mubr.f32.mxu0 0.0
    %380 = vmatmul.mubr.f32.gmra.mrb[0].mxu0 %v313
    %v381 = vpop.f32.mrb[0].mxu0
    %v382 = vadd.f32 0.0, %v381
    %v383 = vpop.f32.mrb[0].mxu0
    %384 = vdwg.mxu0
    %385 = vrot.lane.b32.xlu0 %v117, 96
    %v386 = vpop.permute.xlu0 %385
    %v389 = vsel %vm286, %v308, 0
    %391 = vmatprep.subr.mxu0 0.0
    %392 = vmatpush1.msra.mxu0 %v386
    %393 = vmatprep.subr.mxu0 0.0
    %394 = vmatpush1.msra.mxu0 0.0
    %395 = vmatprep.subr.mxu0 0.0
    %396 = vmatpush1.msra.mxu0 0.0
    %397 = vmatprep.subr.mxu0 0.0
    %398 = vmatpush1.msra.mxu0 0.0
    %399 = vmatprep.subr.mxu0 0.0
    %400 = vmatpush1.msra.mxu0 0.0
    %401 = vmatprep.subr.mxu0 0.0
    %402 = vmatpush1.msra.mxu0 0.0
    %403 = vmatprep.subr.mxu0 0.0
    %404 = vmatpush1.msra.mxu0 0.0
    %405 = vmatprep.subr.mxu0 0.0
    %406 = vmatpush1.msra.mxu0 0.0
    %407 = vmatprep.subr.mxu0 0.0
    %408 = vmatpush1.msra.mxu0 0.0
    %409 = vmatprep.subr.mxu0 0.0
    %410 = vmatpush1.msra.mxu0 0.0
    %411 = vmatprep.subr.mxu0 0.0
    %412 = vmatpush1.msra.mxu0 0.0
    %413 = vmatprep.subr.mxu0 0.0
    %414 = vmatpush1.msra.mxu0 0.0
    %415 = vmatprep.subr.mxu0 0.0
    %416 = vmatpush1.msra.mxu0 0.0
    %417 = vmatprep.subr.mxu0 0.0
    %418 = vmatpush1.msra.mxu0 0.0
    %419 = vmatprep.subr.mxu0 0.0
    %420 = vmatpush1.msra.mxu0 0.0
    %421 = vmatprep.subr.mxu0 0.0
    %422 = vmatpush1.msra.mxu0 0.0
    %423 = vmatprep.subr.mxu0 0.0
    %424 = vmatpush1.msra.mxu0 0.0
    %425 = vmatprep.subr.mxu0 0.0
    %426 = vmatpush1.msra.mxu0 0.0
    %427 = vmatprep.subr.mxu0 0.0
    %428 = vmatpush1.msra.mxu0 0.0
    %429 = vmatprep.subr.mxu0 0.0
    %430 = vmatpush1.msra.mxu0 0.0
    %431 = vmatprep.subr.mxu0 0.0
    %432 = vmatpush1.msra.mxu0 0.0
    %433 = vmatprep.subr.mxu0 0.0
    %434 = vmatpush1.msra.mxu0 0.0
    %435 = vmatprep.subr.mxu0 0.0
    %436 = vmatpush1.msra.mxu0 0.0
    %437 = vmatprep.subr.mxu0 0.0
    %438 = vmatpush1.msra.mxu0 0.0
    %439 = vmatprep.subr.mxu0 0.0
    %440 = vmatpush1.msra.mxu0 0.0
    %441 = vmatprep.subr.mxu0 0.0
    %442 = vmatpush1.msra.mxu0 0.0
    %443 = vmatprep.subr.mxu0 0.0
    %444 = vmatpush1.msra.mxu0 0.0
    %445 = vmatprep.subr.mxu0 0.0
    %446 = vmatpush1.msra.mxu0 0.0
    %447 = vmatprep.subr.mxu0 0.0
    %448 = vmatpush1.msra.mxu0 0.0
    %449 = vmatprep.subr.mxu0 0.0
    %450 = vmatpush1.msra.mxu0 0.0
    %451 = vmatprep.subr.mxu0 0.0
    %452 = vmatpush1.msra.mxu0 0.0
    %453 = vmatprep.subr.mxu0 0.0
    %454 = vmatpush1.msra.mxu0 0.0
    %455 = vmatprep.mubr.f32.mxu0 0.0
    %456 = vmatmul.mubr.f32.gmra.mrb[0].mxu0 %v389
    %v457 = vpop.f32.mrb[0].mxu0
    %v458 = vadd.f32 0.0, %v457
    %v459 = vpop.f32.mrb[0].mxu0
    %460 = vdwg.mxu0
    %461 = vst.msk [vmem:[#allocation2] sm:$0xff] %vm123, %v382
    %462 = vst.msk [vmem:[#allocation2 + $0x8] sm:$0xff] %vm123, %v458
    // Predicated region
    $region10: #{tpu_custom_call.1} parent=1 // pred_check
      _
    $region11: #{tpu_custom_call.1} parent=1 // pred_check_branch
      %464 = sbr.rel (0) target = $region13
    $region12: #{tpu_custom_call.1} parent=1 // pred_region
      %s466 = ssub.s32 256, 256
      %467 = vsyncadd [#allocation3], %s466
      %s468 = sshll.u32 [#allocation2], 4
      %s469 = int_to_ptr.vmem [resolvable:$true] %s468
      %474 = dma.vmem_to_hbm [thread:$0]  %s469, 256, %s2, [#allocation3], 128, 128, 8
    $region13: #{tpu_custom_call.1} parent=1 // pred_fallthru
      _
    // Predicated region
    $region14: #{tpu_custom_call.1} parent=1 // pred_check
      _
    $region15: #{tpu_custom_call.1} parent=1 // pred_check_branch
      %476 = sbr.rel (0) target = $region17
    $region16: #{tpu_custom_call.1} parent=1 // pred_region
      %477 = dma.done [#allocation3], 256
    $region17: #{tpu_custom_call.1} parent=1 // pred_fallthru
      _
    %478 = vsyncpa [#allocation3], 1

</llo_original>
